<compile_context>
chip_gen: v7x
topology: tpu7x:2x2x1
jax: 0.10.0
libtpu: 0.0.40
codegen_flags: <defaults>
</compile_context>

<pallas_src>
import jax
import jax.numpy as jnp
from jax.experimental import pallas as pl
from jax.experimental.pallas import tpu as pltpu


def _round_up(x, m):
    return ((x + m - 1) // m) * m


def _discriminator_kernel(x_ref, p_ref, o_ref):
    # x_ref : [4, S, 128] f32 VMEM tile (feature planes; batch on sublanes+lanes)
    # p_ref : [19] f32 SMEM — folded params: w1'[12] (row-major [3,4]), b1'[3],
    #         w2'[3], b2'[1]
    # o_ref : [S, 128] f32 VMEM output tile
    x0 = x_ref[0]
    x1 = x_ref[1]
    x2 = x_ref[2]
    x3 = x_ref[3]

    # Layer 1 (folded): t_j = tanh(x . (W1[j]/2) + b1[j]/2)
    t = []
    for j in range(3):
        acc = x0 * p_ref[4 * j + 0]
        acc = acc + x1 * p_ref[4 * j + 1]
        acc = acc + x2 * p_ref[4 * j + 2]
        acc = acc + x3 * p_ref[4 * j + 3]
        t.append(jnp.tanh(acc + p_ref[12 + j]))

    # Layer 2 (folded): y = 0.5*tanh( sum_j t_j * (W2[j]/4) + b2/2 + sum(W2)/4 ) + 0.5
    z = t[0] * p_ref[15] + t[1] * p_ref[16] + t[2] * p_ref[17] + p_ref[18]
    o_ref[...] = 0.5 * jnp.tanh(z) + 0.5


def fold_params(w1, b1, w2, b2):
    """Fold the two sigmoid affine transforms into the weights (f32, host side)."""
    w1 = jnp.asarray(w1, jnp.float32).reshape(3, 4)
    b1 = jnp.asarray(b1, jnp.float32).reshape(3)
    w2 = jnp.asarray(w2, jnp.float32).reshape(3)
    b2 = jnp.asarray(b2, jnp.float32).reshape(())
    w1f = 0.5 * w1
    b1f = 0.5 * b1
    w2f = 0.25 * w2
    b2f = 0.5 * b2 + 0.25 * jnp.sum(w2)
    return jnp.concatenate(
        [w1f.reshape(-1), b1f, w2f, b2f.reshape(1)]).astype(jnp.float32)  # [19]


def discriminator_forward(x, w1, b1, w2, b2, *, block_s=2048):
    """Discriminator forward.

    x:  [B, 4] float32
    w1: [3, 4], b1: [3], w2: [1, 3], b2: [1]   (PyTorch Linear [out, in] layout)
    block_s: max sublane-tile size (batch rows per tile = block_s * 128).
    returns [B, 1] float32.
    """
    x = jnp.asarray(x, jnp.float32)
    B = x.shape[0]

    bp = _round_up(max(B, 1), 128)            # pad batch only to the lane boundary
    xt = x.T                                  # [4, B]  (batch on the fast axis)
    if bp != B:
        xt = jnp.pad(xt, ((0, 0), (0, bp - B)))
    s_total = bp // 128
    xt = xt.reshape(4, s_total, 128)          # dense (sublane, lane) planes

    # Sublane-tile size: multiple of 8, big enough to amortize per-step overhead,
    # small enough that (a) double-buffered VMEM stays ~10 MiB and (b) the grid
    # has >= ~4 steps so v7x's two TensorCores both get work.
    if s_total <= 8:
        s_tile = s_total
    else:
        s_tile = min(block_s, _round_up(pl.cdiv(s_total, 4), 8))
    grid = (pl.cdiv(s_total, s_tile),)

    params = fold_params(w1, b1, w2, b2)      # f32[19] -> SMEM

    out = pl.pallas_call(
        _discriminator_kernel,
        out_shape=jax.ShapeDtypeStruct((s_total, 128), jnp.float32),
        grid=grid,
        in_specs=[
            pl.BlockSpec((4, s_tile, 128), lambda i: (0, i, 0)),
            pl.BlockSpec(memory_space=pltpu.MemorySpace.SMEM),
        ],
        out_specs=pl.BlockSpec((s_tile, 128), lambda i: (i, 0)),
        compiler_params=pltpu.CompilerParams(
            dimension_semantics=("parallel",)),
        cost_estimate=pl.CostEstimate(
            flops=38 * bp, transcendentals=4 * bp, bytes_accessed=20 * bp),
    )(xt, params)

    return out.reshape(bp)[:B].reshape(B, 1)


def init_params(key):
    """torch.nn.Linear-style init; weights kept in PyTorch [out, in] layout."""
    k1, k2, k3, k4 = jax.random.split(key, 4)
    lim1 = 1.0 / jnp.sqrt(4.0)
    lim2 = 1.0 / jnp.sqrt(3.0)
    w1 = jax.random.uniform(k1, (3, 4), jnp.float32, -lim1, lim1)
    b1 = jax.random.uniform(k2, (3,), jnp.float32, -lim1, lim1)
    w2 = jax.random.uniform(k3, (1, 3), jnp.float32, -lim2, lim2)
    b2 = jax.random.uniform(k4, (1,), jnp.float32, -lim2, lim2)
    return w1, b1, w2, b2


def _reference(x, w1, b1, w2, b2):
    h = jax.nn.sigmoid(x @ w1.T + b1)
    return jax.nn.sigmoid(h @ w2.T + b2)


if __name__ == "__main__":
    key = jax.random.PRNGKey(0)
    kx1, kx2, kp = jax.random.split(key, 3)
    w1, b1, w2, b2 = init_params(kp)

    # Case 1: tiny batch (toy-GAN scale) -> single [4,1,128] tile with padding.
    x_small = jax.random.normal(kx1, (8, 4), jnp.float32)
    out_small = jax.block_until_ready(
        discriminator_forward(x_small, w1, b1, w2, b2))
    ref_small = _reference(x_small, w1, b1, w2, b2)
    assert out_small.shape == (8, 1)
    assert jnp.allclose(out_small, ref_small, atol=1e-5, rtol=1e-5)

    # Case 2: larger, non-multiple-of-128 batch -> multi-step grid (4 steps)
    # with a clipped last block and a padded lane tail.
    x_big = jax.random.normal(kx2, (3333, 4), jnp.float32)
    out_big = jax.block_until_ready(
        discriminator_forward(x_big, w1, b1, w2, b2))
    ref_big = _reference(x_big, w1, b1, w2, b2)
    assert out_big.shape == (3333, 1)
    assert jnp.allclose(out_big, ref_big, atol=1e-5, rtol=1e-5)

    print("KERNEL_OK")
</pallas_src>

<mosaic_0001>
module attributes {stable_mosaic.version = 11 : i64} {
  func.func @_discriminator_kernel(%arg0: i32, %arg1: memref<4x1x128xf32, #tpu.memory_space<vmem>>, %arg2: memref<19xf32, #tpu.memory_space<smem>>, %arg3: memref<1x128xf32, #tpu.memory_space<vmem>>) attributes {dimension_semantics = [#tpu.dimension_semantics<parallel>], iteration_bounds = array<i64: 1>, scalar_prefetch = 0 : i64, scratch_operands = 0 : i64, tpu.core_type = #tpu.core_type<tc>, window_params = [{transform_indices = @transform_0, window_bounds = array<i64: 4, 1, 128>}, {transform_indices = @transform_1, window_bounds = array<i64: 19>}, {transform_indices = @transform_2, window_bounds = array<i64: 1, 128>}]} {
    %c0 = arith.constant 0 : index
    %c0_0 = arith.constant 0 : index
    %c0_1 = arith.constant 0 : index
    %0 = vector.load %arg1[%c0, %c0_0, %c0_1] : memref<4x1x128xf32, #tpu.memory_space<vmem>>, vector<1x1x128xf32>
    %1 = vector.shape_cast %0 : vector<1x1x128xf32> to vector<1x128xf32>
    %c1 = arith.constant 1 : index
    %c0_2 = arith.constant 0 : index
    %c0_3 = arith.constant 0 : index
    %2 = vector.load %arg1[%c1, %c0_2, %c0_3] : memref<4x1x128xf32, #tpu.memory_space<vmem>>, vector<1x1x128xf32>
    %3 = vector.shape_cast %2 : vector<1x1x128xf32> to vector<1x128xf32>
    %c2 = arith.constant 2 : index
    %c0_4 = arith.constant 0 : index
    %c0_5 = arith.constant 0 : index
    %4 = vector.load %arg1[%c2, %c0_4, %c0_5] : memref<4x1x128xf32, #tpu.memory_space<vmem>>, vector<1x1x128xf32>
    %5 = vector.shape_cast %4 : vector<1x1x128xf32> to vector<1x128xf32>
    %c3 = arith.constant 3 : index
    %c0_6 = arith.constant 0 : index
    %c0_7 = arith.constant 0 : index
    %6 = vector.load %arg1[%c3, %c0_6, %c0_7] : memref<4x1x128xf32, #tpu.memory_space<vmem>>, vector<1x1x128xf32>
    %7 = vector.shape_cast %6 : vector<1x1x128xf32> to vector<1x128xf32>
    %c0_8 = arith.constant 0 : index
    %8 = memref.load %arg2[%c0_8] : memref<19xf32, #tpu.memory_space<smem>>
    %9 = vector.broadcast %8 : f32 to vector<1x128xf32>
    %10 = arith.mulf %1, %9 : vector<1x128xf32>
    %c1_9 = arith.constant 1 : index
    %11 = memref.load %arg2[%c1_9] : memref<19xf32, #tpu.memory_space<smem>>
    %12 = vector.broadcast %11 : f32 to vector<1x128xf32>
    %13 = arith.mulf %3, %12 : vector<1x128xf32>
    %14 = arith.addf %10, %13 : vector<1x128xf32>
    %c2_10 = arith.constant 2 : index
    %15 = memref.load %arg2[%c2_10] : memref<19xf32, #tpu.memory_space<smem>>
    %16 = vector.broadcast %15 : f32 to vector<1x128xf32>
    %17 = arith.mulf %5, %16 : vector<1x128xf32>
    %18 = arith.addf %14, %17 : vector<1x128xf32>
    %c3_11 = arith.constant 3 : index
    %19 = memref.load %arg2[%c3_11] : memref<19xf32, #tpu.memory_space<smem>>
    %20 = vector.broadcast %19 : f32 to vector<1x128xf32>
    %21 = arith.mulf %7, %20 : vector<1x128xf32>
    %22 = arith.addf %18, %21 : vector<1x128xf32>
    %c12 = arith.constant 12 : index
    %23 = memref.load %arg2[%c12] : memref<19xf32, #tpu.memory_space<smem>>
    %24 = vector.broadcast %23 : f32 to vector<1x128xf32>
    %25 = arith.addf %22, %24 : vector<1x128xf32>
    %26 = math.tanh %25 : vector<1x128xf32>
    %c4 = arith.constant 4 : index
    %27 = memref.load %arg2[%c4] : memref<19xf32, #tpu.memory_space<smem>>
    %28 = vector.broadcast %27 : f32 to vector<1x128xf32>
    %29 = arith.mulf %1, %28 : vector<1x128xf32>
    %c5 = arith.constant 5 : index
    %30 = memref.load %arg2[%c5] : memref<19xf32, #tpu.memory_space<smem>>
    %31 = vector.broadcast %30 : f32 to vector<1x128xf32>
    %32 = arith.mulf %3, %31 : vector<1x128xf32>
    %33 = arith.addf %29, %32 : vector<1x128xf32>
    %c6 = arith.constant 6 : index
    %34 = memref.load %arg2[%c6] : memref<19xf32, #tpu.memory_space<smem>>
    %35 = vector.broadcast %34 : f32 to vector<1x128xf32>
    %36 = arith.mulf %5, %35 : vector<1x128xf32>
    %37 = arith.addf %33, %36 : vector<1x128xf32>
    %c7 = arith.constant 7 : index
    %38 = memref.load %arg2[%c7] : memref<19xf32, #tpu.memory_space<smem>>
    %39 = vector.broadcast %38 : f32 to vector<1x128xf32>
    %40 = arith.mulf %7, %39 : vector<1x128xf32>
    %41 = arith.addf %37, %40 : vector<1x128xf32>
    %c13 = arith.constant 13 : index
    %42 = memref.load %arg2[%c13] : memref<19xf32, #tpu.memory_space<smem>>
    %43 = vector.broadcast %42 : f32 to vector<1x128xf32>
    %44 = arith.addf %41, %43 : vector<1x128xf32>
    %45 = math.tanh %44 : vector<1x128xf32>
    %c8 = arith.constant 8 : index
    %46 = memref.load %arg2[%c8] : memref<19xf32, #tpu.memory_space<smem>>
    %47 = vector.broadcast %46 : f32 to vector<1x128xf32>
    %48 = arith.mulf %1, %47 : vector<1x128xf32>
    %c9 = arith.constant 9 : index
    %49 = memref.load %arg2[%c9] : memref<19xf32, #tpu.memory_space<smem>>
    %50 = vector.broadcast %49 : f32 to vector<1x128xf32>
    %51 = arith.mulf %3, %50 : vector<1x128xf32>
    %52 = arith.addf %48, %51 : vector<1x128xf32>
    %c10 = arith.constant 10 : index
    %53 = memref.load %arg2[%c10] : memref<19xf32, #tpu.memory_space<smem>>
    %54 = vector.broadcast %53 : f32 to vector<1x128xf32>
    %55 = arith.mulf %5, %54 : vector<1x128xf32>
    %56 = arith.addf %52, %55 : vector<1x128xf32>
    %c11 = arith.constant 11 : index
    %57 = memref.load %arg2[%c11] : memref<19xf32, #tpu.memory_space<smem>>
    %58 = vector.broadcast %57 : f32 to vector<1x128xf32>
    %59 = arith.mulf %7, %58 : vector<1x128xf32>
    %60 = arith.addf %56, %59 : vector<1x128xf32>
    %c14 = arith.constant 14 : index
    %61 = memref.load %arg2[%c14] : memref<19xf32, #tpu.memory_space<smem>>
    %62 = vector.broadcast %61 : f32 to vector<1x128xf32>
    %63 = arith.addf %60, %62 : vector<1x128xf32>
    %64 = math.tanh %63 : vector<1x128xf32>
    %c15 = arith.constant 15 : index
    %65 = memref.load %arg2[%c15] : memref<19xf32, #tpu.memory_space<smem>>
    %66 = vector.broadcast %65 : f32 to vector<1x128xf32>
    %67 = arith.mulf %26, %66 : vector<1x128xf32>
    %c16 = arith.constant 16 : index
    %68 = memref.load %arg2[%c16] : memref<19xf32, #tpu.memory_space<smem>>
    %69 = vector.broadcast %68 : f32 to vector<1x128xf32>
    %70 = arith.mulf %45, %69 : vector<1x128xf32>
    %71 = arith.addf %67, %70 : vector<1x128xf32>
    %c17 = arith.constant 17 : index
    %72 = memref.load %arg2[%c17] : memref<19xf32, #tpu.memory_space<smem>>
    %73 = vector.broadcast %72 : f32 to vector<1x128xf32>
    %74 = arith.mulf %64, %73 : vector<1x128xf32>
    %75 = arith.addf %71, %74 : vector<1x128xf32>
    %c18 = arith.constant 18 : index
    %76 = memref.load %arg2[%c18] : memref<19xf32, #tpu.memory_space<smem>>
    %77 = vector.broadcast %76 : f32 to vector<1x128xf32>
    %78 = arith.addf %75, %77 : vector<1x128xf32>
    %79 = math.tanh %78 : vector<1x128xf32>
    %cst = arith.constant 5.000000e-01 : f32
    %80 = vector.broadcast %cst : f32 to vector<1x128xf32>
    %81 = arith.mulf %80, %79 : vector<1x128xf32>
    %cst_12 = arith.constant 5.000000e-01 : f32
    %82 = vector.broadcast %cst_12 : f32 to vector<1x128xf32>
    %83 = arith.addf %81, %82 : vector<1x128xf32>
    %c0_13 = arith.constant 0 : index
    %c0_14 = arith.constant 0 : index
    %84 = vector.load %arg3[%c0_13, %c0_14] : memref<1x128xf32, #tpu.memory_space<vmem>>, vector<1x128xf32>
    tpu.vector_store %arg3[%c0_13, %c0_14], %83 {strides = array<i32>} : memref<1x128xf32, #tpu.memory_space<vmem>>, vector<1x128xf32>,
    return
  }
  func.func @transform_0(%arg0: i32) -> (i32, i32, i32) {
    %c0_i32 = arith.constant 0 : i32
    %c0_i32_0 = arith.constant 0 : i32
    %c0_i32_1 = arith.constant 0 : i32
    return %c0_i32, %arg0, %c0_i32_0 : i32, i32, i32
  }
  func.func @transform_1(%arg0: i32) -> i32 {
    %c0_i32 = arith.constant 0 : i32
    %c0_i32_0 = arith.constant 0 : i32
    return %c0_i32 : i32
  }
  func.func @transform_2(%arg0: i32) -> (i32, i32) {
    %c0_i32 = arith.constant 0 : i32
    %c0_i32_0 = arith.constant 0 : i32
    return %arg0, %c0_i32 : i32, i32
  }
}

</mosaic_0001>

<llo_original>
// kernel: tpu_custom_call.1
$region0: #{tpu_custom_call.1}
  #allocation0 [shape = 'u32[]', space=smem, size = 0x4, offset = 0x4, fixed_abs, tag = 'smem constant byte address 0x4 - core index']
  #allocation1 [shape = 'u32[144,128]{1,0:T(1,128)}', space=vmem, size = 0x12000, scoped, tag = 'internal scratch']
  %s0 = inlined_call_operand.hbm [shape: f32[4,1,128], index: 0, kind: input, shape index: {}]
  %s1 = inlined_call_operand.vmem [shape: f32[19], index: 1, kind: input, shape index: {}]
  %s2 = inlined_call_operand.hbm [shape: f32[1,128], index: 2, kind: output, shape index: {}]
  %s3 = sld [smem:[#allocation0]]
  $region26: #{tpu_custom_call.1} parent=0
    _
  %s5 = ssub.s32 1, %s3
  %s6 = scalar_select 0, %s5, %s3
  $region1: #{tpu_custom_call.1} parent=0
    #allocation2 [shape = 'u8[2048]{0}', space=vmem, size = 0x800, scoped, tag = 'input window, operand 0, single buffered']
    #allocation3 [shape = 's32[1]{0}', space=sflag, size = 0x4, scoped, tag = 'scoped memory for tpu_custom_call.1']
    #allocation4 [shape = 's32[1]{0}', space=sflag, size = 0x4, scoped, tag = 'scoped memory for tpu_custom_call.1']
    #allocation5 [shape = 's32[1]{0}', space=sflag, size = 0x4, scoped, tag = 'scoped memory for tpu_custom_call.1']
    #allocation6 [shape = 'u8[512]{0}', space=smem, size = 0x200, scoped, tag = 'input window, operand 1, single buffered']
    #allocation7 [shape = 'u8[512]{0}', space=vmem, size = 0x400, scoped, tag = 'output window, operand 0, single buffered']
    %7 = vsyncpa [#allocation3], 0
    %8 = vsyncpa [#allocation5], 0
    %9 = vsyncpa [#allocation4], 0
    // Predicated region
    $region2: #{tpu_custom_call.1} parent=1 // pred_check
      _
    $region3: #{tpu_custom_call.1} parent=1 // pred_check_branch
      %11 = sbr.rel (0) target = $region5
    $region4: #{tpu_custom_call.1} parent=1 // pred_region
      %s13 = ssub.s32 64, 64
      %14 = vsyncadd [#allocation3], %s13
      %s15 = sshll.u32 [#allocation2], 4
      %s16 = int_to_ptr.vmem [resolvable:$true] %s15
      %21 = dma.hbm_to_vmem [thread:$0]  %s0, 64, %s16, [#allocation3], 16, 16, 1
    $region5: #{tpu_custom_call.1} parent=1 // pred_fallthru
      _
    // Predicated region
    $region6: #{tpu_custom_call.1} parent=1 // pred_check
      _
    $region7: #{tpu_custom_call.1} parent=1 // pred_check_branch
      %23 = sbr.rel (0) target = $region9
    $region8: #{tpu_custom_call.1} parent=1 // pred_region
      %s25 = ssub.s32 16, 16
      %26 = vsyncadd [#allocation5], %s25
      %s28 = sshll.u32 %s1, 4
      %s29 = int_to_ptr.vmem [resolvable:$true] %s28
      %31 = dma.vmem_to_smem %s29, 16, [#allocation6], [#allocation5]
    $region9: #{tpu_custom_call.1} parent=1 // pred_fallthru
      _
    // Predicated region
    $region10: #{tpu_custom_call.1} parent=1 // pred_check
      _
    $region11: #{tpu_custom_call.1} parent=1 // pred_check_branch
      %33 = sbr.rel (0) target = $region13
    $region12: #{tpu_custom_call.1} parent=1 // pred_region
      %34 = dma.done [#allocation3], 64
    $region13: #{tpu_custom_call.1} parent=1 // pred_fallthru
      _
    // Predicated region
    $region14: #{tpu_custom_call.1} parent=1 // pred_check
      _
    $region15: #{tpu_custom_call.1} parent=1 // pred_check_branch
      %36 = sbr.rel (0) target = $region17
    $region16: #{tpu_custom_call.1} parent=1 // pred_region
      %37 = dma.done [#allocation5], 16
    $region17: #{tpu_custom_call.1} parent=1 // pred_fallthru
      _
    %38 = sfence
    %v39 = vld [vmem:[#allocation2] sm:$0x1]
    %s40 = scalar_lea.vmem [#allocation2], 1
    %v41 = vld [vmem:[%s40] sm:$0x1]
    %s42 = scalar_lea.vmem [#allocation2], 2
    %v43 = vld [vmem:[%s42] sm:$0x1]
    %s44 = scalar_lea.vmem [#allocation2], 3
    %v45 = vld [vmem:[%s44] sm:$0x1]
    %s46 = sld [smem:[#allocation6]]
    %v47 = vstv %s46
    %v48 = vmul.f32 %v39, %v47
    %s49 = sld [smem:[#allocation6 + $0x1]]
    %v50 = vstv %s49
    %v51 = vmul.f32 %v41, %v50
    %v52 = vadd.f32 %v48, %v51
    %s53 = sld [smem:[#allocation6 + $0x2]]
    %v54 = vstv %s53
    %v55 = vmul.f32 %v43, %v54
    %v56 = vadd.f32 %v52, %v55
    %s57 = sld [smem:[#allocation6 + $0x3]]
    %v58 = vstv %s57
    %v59 = vmul.f32 %v45, %v58
    %v60 = vadd.f32 %v56, %v59
    %s61 = sld [smem:[#allocation6 + $0xc]]
    %v62 = vstv %s61
    %v63 = vadd.f32 %v60, %v62
    %v64 = vtanh.pop %v63
    %s65 = sld [smem:[#allocation6 + $0x4]]
    %v66 = vstv %s65
    %v67 = vmul.f32 %v39, %v66
    %s68 = sld [smem:[#allocation6 + $0x5]]
    %v69 = vstv %s68
    %v70 = vmul.f32 %v41, %v69
    %v71 = vadd.f32 %v67, %v70
    %s72 = sld [smem:[#allocation6 + $0x6]]
    %v73 = vstv %s72
    %v74 = vmul.f32 %v43, %v73
    %v75 = vadd.f32 %v71, %v74
    %s76 = sld [smem:[#allocation6 + $0x7]]
    %v77 = vstv %s76
    %v78 = vmul.f32 %v45, %v77
    %v79 = vadd.f32 %v75, %v78
    %s80 = sld [smem:[#allocation6 + $0xd]]
    %v81 = vstv %s80
    %v82 = vadd.f32 %v79, %v81
    %v83 = vtanh.pop %v82
    %s84 = sld [smem:[#allocation6 + $0x8]]
    %v85 = vstv %s84
    %v86 = vmul.f32 %v39, %v85
    %s87 = sld [smem:[#allocation6 + $0x9]]
    %v88 = vstv %s87
    %v89 = vmul.f32 %v41, %v88
    %v90 = vadd.f32 %v86, %v89
    %s91 = sld [smem:[#allocation6 + $0xa]]
    %v92 = vstv %s91
    %v93 = vmul.f32 %v43, %v92
    %v94 = vadd.f32 %v90, %v93
    %s95 = sld [smem:[#allocation6 + $0xb]]
    %v96 = vstv %s95
    %v97 = vmul.f32 %v45, %v96
    %v98 = vadd.f32 %v94, %v97
    %s99 = sld [smem:[#allocation6 + $0xe]]
    %v100 = vstv %s99
    %v101 = vadd.f32 %v98, %v100
    %v102 = vtanh.pop %v101
    %s103 = sld [smem:[#allocation6 + $0xf]]
    %v104 = vstv %s103
    %v105 = vmul.f32 %v64, %v104
    %s106 = sld [smem:[#allocation6 + $0x10]]
    %v107 = vstv %s106
    %v108 = vmul.f32 %v83, %v107
    %v109 = vadd.f32 %v105, %v108
    %s110 = sld [smem:[#allocation6 + $0x11]]
    %v111 = vstv %s110
    %v112 = vmul.f32 %v102, %v111
    %v113 = vadd.f32 %v109, %v112
    %s114 = sld [smem:[#allocation6 + $0x12]]
    %v115 = vstv %s114
    %v116 = vadd.f32 %v113, %v115
    %v117 = vtanh.pop %v116
    %v118 = vmul.f32 %v117, 0.5
    %v119 = vadd.f32 %v118, 0.5
    %120 = vst [vmem:[#allocation7] sm:$0x1] %v119
    // Predicated region
    $region18: #{tpu_custom_call.1} parent=1 // pred_check
      _
    $region19: #{tpu_custom_call.1} parent=1 // pred_check_branch
      %122 = sbr.rel (0) target = $region21
    $region20: #{tpu_custom_call.1} parent=1 // pred_region
      %s124 = ssub.s32 16, 16
      %125 = vsyncadd [#allocation4], %s124
      %s127 = sshll.u32 [#allocation7], 4
      %s128 = int_to_ptr.vmem [resolvable:$true] %s127
      %130 = dma.vmem_to_hbm [thread:$0]  %s128, 16, %s2, [#allocation4]
    $region21: #{tpu_custom_call.1} parent=1 // pred_fallthru
      _
    // Predicated region
    $region22: #{tpu_custom_call.1} parent=1 // pred_check
      _
    $region23: #{tpu_custom_call.1} parent=1 // pred_check_branch
      %132 = sbr.rel (0) target = $region25
    $region24: #{tpu_custom_call.1} parent=1 // pred_region
      %133 = dma.done [#allocation4], 16
    $region25: #{tpu_custom_call.1} parent=1 // pred_fallthru
      _
    %134 = vsyncpa [#allocation3], 1
    %135 = vsyncpa [#allocation4], 1
    %136 = vsyncpa [#allocation5], 1

</llo_original>
